<compile_context>
chip_gen: v5e
topology: v5e:2x2
jax: 0.10.0
libtpu: 0.0.40
codegen_flags: <defaults>
</compile_context>

<pallas_src>
import math
from functools import partial

import jax
import jax.numpy as jnp
from jax.experimental import pallas as pl
from jax.experimental.pallas import tpu as pltpu

MAX_LOG_STD = 0.5
MIN_LOG_STD = -20.0

_LANE = 128
_SUBLANE = 8


def _ru(x, m):
    return (x + m - 1) // m * m


# ----------------------------- params & packing -----------------------------

def init_params(key, state_dim, hidden_size, latent_dim):
    """PyTorch nn.Linear default init: U(-1/sqrt(fan_in), 1/sqrt(fan_in))."""
    def linear_params(k, fan_in, fan_out):
        kw, kb = jax.random.split(k)
        bound = 1.0 / math.sqrt(fan_in)
        w = jax.random.uniform(kw, (fan_in, fan_out), jnp.float32, -bound, bound)
        b = jax.random.uniform(kb, (1, fan_out), jnp.float32, -bound, bound)
        return w, b

    keys = jax.random.split(key, 8)
    p = {}
    p["ew1"], p["eb1"] = linear_params(keys[0], state_dim, hidden_size)
    p["ew2"], p["eb2"] = linear_params(keys[1], hidden_size, hidden_size)
    p["ew3"], p["eb3"] = linear_params(keys[2], hidden_size, hidden_size)
    p["wmu"], p["bmu"] = linear_params(keys[3], hidden_size, latent_dim)
    p["wls"], p["bls"] = linear_params(keys[4], hidden_size, latent_dim)
    p["dw1"], p["db1"] = linear_params(keys[5], latent_dim, hidden_size)
    p["dw2"], p["db2"] = linear_params(keys[6], hidden_size, hidden_size)
    p["dw3"], p["db3"] = linear_params(keys[7], hidden_size, state_dim)
    return p


def pack_params(params, state_dim, hidden_size, latent_dim,
                compute_dtype=jnp.bfloat16):
    """Pack the 16 linear params into 4 weight buffers + 1 bias stack.

    Done ONCE outside the kernel.  Zero padding is used so that padded
    rows/columns propagate exact zeros through the whole network.  bf16 is the
    production compute dtype; f32 is a validation mode.
    """
    S, H, L = state_dim, hidden_size, latent_dim
    S8 = _ru(S, _SUBLANE)          # real K of the first matmul (sublane tile)
    HP = _ru(H, _LANE)
    LP = _ru(L, _LANE)
    SP = _ru(S, _LANE)
    KT = max(HP, LP)               # common K of the trunk stack
    BW = max(HP, 2 * LP, SP)       # bias stack width

    def pad2(w, r, c):
        return jnp.pad(w, ((0, r - w.shape[0]), (0, c - w.shape[1])))

    w_first = pad2(params["ew1"], S8, HP).astype(compute_dtype)        # (S8, HP)
    w_trunk = jnp.stack([                                              # (4, KT, HP)
        pad2(params["ew2"], KT, HP),
        pad2(params["ew3"], KT, HP),
        pad2(params["dw1"], KT, HP),
        pad2(params["dw2"], KT, HP),
    ]).astype(compute_dtype)
    w_head = jnp.concatenate(                                          # (HP, 2*LP)
        [pad2(params["wmu"], HP, LP), pad2(params["wls"], HP, LP)],
        axis=1).astype(compute_dtype)
    w_out = pad2(params["dw3"], HP, SP).astype(compute_dtype)          # (HP, SP)

    def pad_b(b):
        b = b.reshape(-1)
        return jnp.pad(b, (0, BW - b.shape[0]))

    b_head = jnp.concatenate(
        [jnp.pad(params["bmu"].reshape(-1), (0, LP - L)),
         jnp.pad(params["bls"].reshape(-1), (0, LP - L))])
    b_stack = jnp.stack([                                              # (7, BW)
        pad_b(params["eb1"]), pad_b(params["eb2"]), pad_b(params["eb3"]),
        pad_b(b_head),
        pad_b(params["db1"]), pad_b(params["db2"]), pad_b(params["db3"]),
    ]).astype(jnp.float32)

    dims = dict(S=S, H=H, L=L, S8=S8, HP=HP, LP=LP, SP=SP, KT=KT, BW=BW)
    return w_first, w_trunk, w_head, w_out, b_stack, dims


# --------------------------------- kernel -----------------------------------

def _vae_kernel(x_ref, eps_ref, w1_ref, wt_ref, wh_ref, wo_ref, b_ref, out_ref,
                *, dims, compute_dtype):
    S8, HP, LP, SP, KT = (dims[k] for k in ("S8", "HP", "LP", "SP", "KT"))
    f32 = jnp.float32
    cd = compute_dtype

    def mm(h, w):
        # MXU matmul in compute_dtype with f32 accumulation.
        return jnp.dot(h.astype(cd), w, preferred_element_type=f32)

    def pad_cols(h, width):
        # static (trace-time) zero pad; no-op at the default sizes
        c = h.shape[1]
        return h if c == width else jnp.pad(h, ((0, 0), (0, width - c)))

    def bias(i, w):
        return b_ref[i:i + 1, :w]                       # (1, w) broadcast

    x = pad_cols(x_ref[...].astype(f32), S8)            # (TB, S8)

    # ---- encoder trunk ----
    h = jnp.maximum(mm(x, w1_ref[...]) + bias(0, HP), 0.0)
    h = jnp.maximum(mm(pad_cols(h, KT), wt_ref[0]) + bias(1, HP), 0.0)
    h = jnp.maximum(mm(pad_cols(h, KT), wt_ref[1]) + bias(2, HP), 0.0)

    # ---- fused mu / log_std head ----
    heads = mm(h, wh_ref[...]) + bias(3, 2 * LP)        # (TB, 2*LP)
    mu = heads[:, :LP]
    log_std = jnp.clip(heads[:, LP:2 * LP], MIN_LOG_STD, MAX_LOG_STD)
    sigma = jnp.exp(log_std)

    # ---- reparameterization: z = mu + eps * sigma ----
    z = mu + eps_ref[...].astype(f32) * sigma           # (TB, LP)

    # ---- decoder ----
    d = jnp.maximum(mm(pad_cols(z, KT), wt_ref[2]) + bias(4, HP), 0.0)
    d = jnp.maximum(mm(pad_cols(d, KT), wt_ref[3]) + bias(5, HP), 0.0)
    recon = mm(d, wo_ref[...]) + bias(6, SP)            # (TB, SP)

    # ---- lane-dense packed output slab: [recon | mu | sigma] ----
    out_ref[:, :SP] = recon.astype(out_ref.dtype)
    out_ref[:, SP:SP + LP] = mu.astype(out_ref.dtype)
    out_ref[:, SP + LP:SP + 2 * LP] = sigma.astype(out_ref.dtype)


# -------------------------------- wrapper -----------------------------------

def vae_forward(state, eps, w_first, w_trunk, w_head, w_out, b_stack, dims, *,
                batch_tile=None, interpret=False):
    """Returns (reconstruction, mu, sigma) exactly like the PyTorch module
    (eps is the externally drawn standard-normal noise of torch.randn_like)."""
    S, L = dims["S"], dims["L"]
    S8, HP, LP, SP, KT = dims["S8"], dims["HP"], dims["LP"], dims["SP"], dims["KT"]
    B = state.shape[0]
    compute_dtype = w_first.dtype

    # Batch tile policy: one big tile by default (v5e/v6e: grid is a serial
    # loop, each step ~0.35us overhead).  On v7x pass batch_tile=BP//2 to give
    # each TensorCore one tile.
    BP = _ru(B, _SUBLANE)
    if batch_tile is None:
        TB = min(BP, 512)
    else:
        TB = min(_ru(batch_tile, _SUBLANE), BP)
    BP = _ru(BP, TB)

    x = state.astype(jnp.float32)                       # (B, S) no padded copy
    e = eps.astype(jnp.float32)                         # (B, L)
    if L < LP:                                          # skipped when L == LP
        e = jnp.pad(e, ((0, 0), (0, LP - L)))
    if BP != B:                                         # only ragged batches
        x = jnp.pad(x, ((0, BP - B), (0, 0)))
        e = jnp.pad(e, ((0, BP - B), (0, 0)))

    out_w = SP + 2 * LP
    const2 = lambda i: (0, 0)
    const3 = lambda i: (0, 0, 0)

    kernel = partial(_vae_kernel, dims=dims, compute_dtype=compute_dtype)
    slab = pl.pallas_call(
        kernel,
        out_shape=jax.ShapeDtypeStruct((BP, out_w), jnp.float32),
        grid=(BP // TB,),
        in_specs=[
            pl.BlockSpec((TB, S), lambda i: (i, 0)),        # state tile (real S)
            pl.BlockSpec((TB, LP), lambda i: (i, 0)),       # eps tile
            pl.BlockSpec((S8, HP), const2),                 # first-layer weight
            pl.BlockSpec((4, KT, HP), const3),              # trunk weights
            pl.BlockSpec((HP, 2 * LP), const2),             # fused head weight
            pl.BlockSpec((HP, SP), const2),                 # output weight
            pl.BlockSpec(b_stack.shape, const2),            # bias stack
        ],
        out_specs=pl.BlockSpec((TB, out_w), lambda i: (i, 0)),
        compiler_params=pltpu.CompilerParams(
            dimension_semantics=("parallel",),              # v7x: shard batch
            vmem_limit_bytes=32 * 1024 * 1024),
        interpret=interpret,
    )(x, e, w_first, w_trunk, w_head, w_out, b_stack)

    recon = slab[:B, :S]
    mu = slab[:B, SP:SP + L]
    sigma = slab[:B, SP + LP:SP + LP + L]
    return recon, mu, sigma


# ------------------------------- reference ----------------------------------

def vae_forward_ref(state, eps, p, compute_dtype=jnp.float32):
    """Pure-JAX reference mirroring the PyTorch module (same matmul dtype)."""
    f32 = jnp.float32

    def lin(h, w, b):
        return jnp.dot(h.astype(compute_dtype), w.astype(compute_dtype),
                       preferred_element_type=f32) + b.astype(f32)

    relu = lambda v: jnp.maximum(v, 0.0)
    h = relu(lin(state, p["ew1"], p["eb1"]))
    h = relu(lin(h, p["ew2"], p["eb2"]))
    h = relu(lin(h, p["ew3"], p["eb3"]))
    mu = lin(h, p["wmu"], p["bmu"])
    log_std = jnp.clip(lin(h, p["wls"], p["bls"]), MIN_LOG_STD, MAX_LOG_STD)
    sigma = jnp.exp(log_std)
    z = mu + eps * sigma
    d = relu(lin(z, p["dw1"], p["db1"]))
    d = relu(lin(d, p["dw2"], p["db2"]))
    return lin(d, p["dw3"], p["db3"]), mu, sigma


if __name__ == "__main__":
    batch = 16
    state_dim = 16
    hidden_size = 128    # PyTorch module defaults
    latent_dim = 128

    key = jax.random.PRNGKey(0)
    k_params, k_state, k_eps = jax.random.split(key, 3)

    params = init_params(k_params, state_dim, hidden_size, latent_dim)
    state = jax.random.normal(k_state, (batch, state_dim), jnp.float32)
    # torch.randn_like(mu) equivalent, drawn outside the kernel for determinism
    eps = jax.random.normal(k_eps, (batch, latent_dim), jnp.float32)

    # ---- production path: bf16 weights (MXU-native on v6e / v7x) ----
    w1, wt, wh, wo, bs, dims = pack_params(params, state_dim, hidden_size,
                                           latent_dim,
                                           compute_dtype=jnp.bfloat16)
    fwd = jax.jit(partial(vae_forward, dims=dims))
    recon, mu, sigma = fwd(state, eps, w1, wt, wh, wo, bs)
    jax.block_until_ready((recon, mu, sigma))
    r_ref, mu_ref, s_ref = vae_forward_ref(state, eps, params, jnp.bfloat16)
    assert recon.shape == (batch, state_dim)
    assert mu.shape == (batch, latent_dim) and sigma.shape == (batch, latent_dim)
    assert jnp.allclose(recon, r_ref, atol=1e-2, rtol=1e-2)
    assert jnp.allclose(mu, mu_ref, atol=1e-2, rtol=1e-2)
    assert jnp.allclose(sigma, s_ref, atol=1e-2, rtol=1e-2)

    # ---- validation path: f32 weights (exact module numerics) ----
    w1f, wtf, whf, wof, bsf, dimsf = pack_params(params, state_dim, hidden_size,
                                                 latent_dim,
                                                 compute_dtype=jnp.float32)
    fwd32 = jax.jit(partial(vae_forward, dims=dimsf))
    recon32, mu32, sigma32 = fwd32(state, eps, w1f, wtf, whf, wof, bsf)
    jax.block_until_ready((recon32, mu32, sigma32))
    r32, m32, s32 = vae_forward_ref(state, eps, params, jnp.float32)
    assert jnp.allclose(recon32, r32, atol=1e-4, rtol=1e-4)
    assert jnp.allclose(mu32, m32, atol=1e-4, rtol=1e-4)
    assert jnp.allclose(sigma32, s32, atol=1e-4, rtol=1e-4)

    print("KERNEL_OK")
</pallas_src>

<mosaic_0001>
module attributes {stable_mosaic.version = 11 : i64} {
  func.func @_vae_kernel(%arg0: i32, %arg1: memref<16x16xf32, #tpu.memory_space<vmem>>, %arg2: memref<16x128xf32, #tpu.memory_space<vmem>>, %arg3: memref<16x128xbf16, #tpu.memory_space<vmem>>, %arg4: memref<4x128x128xbf16, #tpu.memory_space<vmem>>, %arg5: memref<128x256xbf16, #tpu.memory_space<vmem>>, %arg6: memref<128x128xbf16, #tpu.memory_space<vmem>>, %arg7: memref<7x256xf32, #tpu.memory_space<vmem>>, %arg8: memref<16x384xf32, #tpu.memory_space<vmem>>) attributes {dimension_semantics = [#tpu.dimension_semantics<parallel>], iteration_bounds = array<i64: 1>, scalar_prefetch = 0 : i64, scratch_operands = 0 : i64, tpu.core_type = #tpu.core_type<tc>, window_params = [{transform_indices = @transform_0, window_bounds = array<i64: 16, 16>}, {transform_indices = @transform_1, window_bounds = array<i64: 16, 128>}, {pipeline_mode = #tpu.pipeline_mode<synchronous>, transform_indices = @transform_2, window_bounds = array<i64: 16, 128>}, {pipeline_mode = #tpu.pipeline_mode<synchronous>, transform_indices = @transform_3, window_bounds = array<i64: 4, 128, 128>}, {pipeline_mode = #tpu.pipeline_mode<synchronous>, transform_indices = @transform_4, window_bounds = array<i64: 128, 256>}, {pipeline_mode = #tpu.pipeline_mode<synchronous>, transform_indices = @transform_5, window_bounds = array<i64: 128, 128>}, {pipeline_mode = #tpu.pipeline_mode<synchronous>, transform_indices = @transform_6, window_bounds = array<i64: 7, 256>}, {transform_indices = @transform_7, window_bounds = array<i64: 16, 384>}]} {
    %c0 = arith.constant 0 : index
    %c0_0 = arith.constant 0 : index
    %0 = vector.load %arg1[%c0, %c0_0] : memref<16x16xf32, #tpu.memory_space<vmem>>, vector<16x16xf32>
    %c0_1 = arith.constant 0 : index
    %c0_2 = arith.constant 0 : index
    %1 = vector.load %arg3[%c0_1, %c0_2] : memref<16x128xbf16, #tpu.memory_space<vmem>>, vector<16x128xbf16>
    %2 = arith.truncf %0 : vector<16x16xf32> to vector<16x16xbf16>
    %cst = arith.constant dense<0.000000e+00> : vector<16x128xf32>
    %3 = tpu.matmul %2, %1, %cst {dimension_numbers = #tpu.dot_dimension_numbers<[1], [0], [0], [1], [0, 0, 1, 1], [], []>} : vector<16x16xbf16>, vector<16x128xbf16>, vector<16x128xf32> -> vector<16x128xf32>
    %c0_3 = arith.constant 0 : index
    %c0_4 = arith.constant 0 : index
    %4 = vector.load %arg7[%c0_3, %c0_4] : memref<7x256xf32, #tpu.memory_space<vmem>>, vector<1x128xf32>
    %5 = vector.broadcast %4 : vector<1x128xf32> to vector<16x128xf32>
    %6 = arith.addf %3, %5 : vector<16x128xf32>
    %cst_5 = arith.constant 0.000000e+00 : f32
    %7 = vector.broadcast %cst_5 : f32 to vector<16x128xf32>
    %8 = arith.maximumf %6, %7 : vector<16x128xf32>
    %c0_6 = arith.constant 0 : index
    %c0_7 = arith.constant 0 : index
    %c0_8 = arith.constant 0 : index
    %9 = vector.load %arg4[%c0_6, %c0_7, %c0_8] : memref<4x128x128xbf16, #tpu.memory_space<vmem>>, vector<1x128x128xbf16>
    %10 = vector.shape_cast %9 : vector<1x128x128xbf16> to vector<128x128xbf16>
    %11 = arith.truncf %8 : vector<16x128xf32> to vector<16x128xbf16>
    %cst_9 = arith.constant dense<0.000000e+00> : vector<16x128xf32>
    %12 = tpu.matmul %11, %10, %cst_9 {dimension_numbers = #tpu.dot_dimension_numbers<[1], [0], [0], [1], [0, 0, 1, 1], [], []>} : vector<16x128xbf16>, vector<128x128xbf16>, vector<16x128xf32> -> vector<16x128xf32>
    %c1 = arith.constant 1 : index
    %c0_10 = arith.constant 0 : index
    %13 = vector.load %arg7[%c1, %c0_10] : memref<7x256xf32, #tpu.memory_space<vmem>>, vector<1x128xf32>
    %14 = vector.broadcast %13 : vector<1x128xf32> to vector<16x128xf32>
    %15 = arith.addf %12, %14 : vector<16x128xf32>
    %cst_11 = arith.constant 0.000000e+00 : f32
    %16 = vector.broadcast %cst_11 : f32 to vector<16x128xf32>
    %17 = arith.maximumf %15, %16 : vector<16x128xf32>
    %c1_12 = arith.constant 1 : index
    %c0_13 = arith.constant 0 : index
    %c0_14 = arith.constant 0 : index
    %18 = vector.load %arg4[%c1_12, %c0_13, %c0_14] : memref<4x128x128xbf16, #tpu.memory_space<vmem>>, vector<1x128x128xbf16>
    %19 = vector.shape_cast %18 : vector<1x128x128xbf16> to vector<128x128xbf16>
    %20 = arith.truncf %17 : vector<16x128xf32> to vector<16x128xbf16>
    %cst_15 = arith.constant dense<0.000000e+00> : vector<16x128xf32>
    %21 = tpu.matmul %20, %19, %cst_15 {dimension_numbers = #tpu.dot_dimension_numbers<[1], [0], [0], [1], [0, 0, 1, 1], [], []>} : vector<16x128xbf16>, vector<128x128xbf16>, vector<16x128xf32> -> vector<16x128xf32>
    %c2 = arith.constant 2 : index
    %c0_16 = arith.constant 0 : index
    %22 = vector.load %arg7[%c2, %c0_16] : memref<7x256xf32, #tpu.memory_space<vmem>>, vector<1x128xf32>
    %23 = vector.broadcast %22 : vector<1x128xf32> to vector<16x128xf32>
    %24 = arith.addf %21, %23 : vector<16x128xf32>
    %cst_17 = arith.constant 0.000000e+00 : f32
    %25 = vector.broadcast %cst_17 : f32 to vector<16x128xf32>
    %26 = arith.maximumf %24, %25 : vector<16x128xf32>
    %c0_18 = arith.constant 0 : index
    %c0_19 = arith.constant 0 : index
    %27 = vector.load %arg5[%c0_18, %c0_19] : memref<128x256xbf16, #tpu.memory_space<vmem>>, vector<128x256xbf16>
    %28 = arith.truncf %26 : vector<16x128xf32> to vector<16x128xbf16>
    %cst_20 = arith.constant dense<0.000000e+00> : vector<16x256xf32>
    %29 = tpu.matmul %28, %27, %cst_20 {dimension_numbers = #tpu.dot_dimension_numbers<[1], [0], [0], [1], [0, 0, 1, 1], [], []>} : vector<16x128xbf16>, vector<128x256xbf16>, vector<16x256xf32> -> vector<16x256xf32>
    %c3 = arith.constant 3 : index
    %c0_21 = arith.constant 0 : index
    %30 = vector.load %arg7[%c3, %c0_21] : memref<7x256xf32, #tpu.memory_space<vmem>>, vector<1x256xf32>
    %31 = vector.broadcast %30 : vector<1x256xf32> to vector<16x256xf32>
    %32 = arith.addf %29, %31 : vector<16x256xf32>
    %33 = vector.extract_strided_slice %32 {offsets = [0, 0], sizes = [16, 128], strides = [1, 1]} : vector<16x256xf32> to vector<16x128xf32>
    %34 = vector.extract_strided_slice %32 {offsets = [0, 128], sizes = [16, 128], strides = [1, 1]} : vector<16x256xf32> to vector<16x128xf32>
    %cst_22 = arith.constant -2.000000e+01 : f32
    %cst_23 = arith.constant 5.000000e-01 : f32
    %35 = vector.broadcast %cst_22 : f32 to vector<16x128xf32>
    %36 = arith.maximumf %35, %34 : vector<16x128xf32>
    %37 = vector.broadcast %cst_23 : f32 to vector<16x128xf32>
    %38 = arith.minimumf %37, %36 : vector<16x128xf32>
    %39 = math.exp %38 : vector<16x128xf32>
    %c0_24 = arith.constant 0 : index
    %c0_25 = arith.constant 0 : index
    %40 = vector.load %arg2[%c0_24, %c0_25] : memref<16x128xf32, #tpu.memory_space<vmem>>, vector<16x128xf32>
    %41 = arith.mulf %40, %39 : vector<16x128xf32>
    %42 = arith.addf %33, %41 : vector<16x128xf32>
    %c2_26 = arith.constant 2 : index
    %c0_27 = arith.constant 0 : index
    %c0_28 = arith.constant 0 : index
    %43 = vector.load %arg4[%c2_26, %c0_27, %c0_28] : memref<4x128x128xbf16, #tpu.memory_space<vmem>>, vector<1x128x128xbf16>
    %44 = vector.shape_cast %43 : vector<1x128x128xbf16> to vector<128x128xbf16>
    %45 = arith.truncf %42 : vector<16x128xf32> to vector<16x128xbf16>
    %cst_29 = arith.constant dense<0.000000e+00> : vector<16x128xf32>
    %46 = tpu.matmul %45, %44, %cst_29 {dimension_numbers = #tpu.dot_dimension_numbers<[1], [0], [0], [1], [0, 0, 1, 1], [], []>} : vector<16x128xbf16>, vector<128x128xbf16>, vector<16x128xf32> -> vector<16x128xf32>
    %c4 = arith.constant 4 : index
    %c0_30 = arith.constant 0 : index
    %47 = vector.load %arg7[%c4, %c0_30] : memref<7x256xf32, #tpu.memory_space<vmem>>, vector<1x128xf32>
    %48 = vector.broadcast %47 : vector<1x128xf32> to vector<16x128xf32>
    %49 = arith.addf %46, %48 : vector<16x128xf32>
    %cst_31 = arith.constant 0.000000e+00 : f32
    %50 = vector.broadcast %cst_31 : f32 to vector<16x128xf32>
    %51 = arith.maximumf %49, %50 : vector<16x128xf32>
    %c3_32 = arith.constant 3 : index
    %c0_33 = arith.constant 0 : index
    %c0_34 = arith.constant 0 : index
    %52 = vector.load %arg4[%c3_32, %c0_33, %c0_34] : memref<4x128x128xbf16, #tpu.memory_space<vmem>>, vector<1x128x128xbf16>
    %53 = vector.shape_cast %52 : vector<1x128x128xbf16> to vector<128x128xbf16>
    %54 = arith.truncf %51 : vector<16x128xf32> to vector<16x128xbf16>
    %cst_35 = arith.constant dense<0.000000e+00> : vector<16x128xf32>
    %55 = tpu.matmul %54, %53, %cst_35 {dimension_numbers = #tpu.dot_dimension_numbers<[1], [0], [0], [1], [0, 0, 1, 1], [], []>} : vector<16x128xbf16>, vector<128x128xbf16>, vector<16x128xf32> -> vector<16x128xf32>
    %c5 = arith.constant 5 : index
    %c0_36 = arith.constant 0 : index
    %56 = vector.load %arg7[%c5, %c0_36] : memref<7x256xf32, #tpu.memory_space<vmem>>, vector<1x128xf32>
    %57 = vector.broadcast %56 : vector<1x128xf32> to vector<16x128xf32>
    %58 = arith.addf %55, %57 : vector<16x128xf32>
    %cst_37 = arith.constant 0.000000e+00 : f32
    %59 = vector.broadcast %cst_37 : f32 to vector<16x128xf32>
    %60 = arith.maximumf %58, %59 : vector<16x128xf32>
    %c0_38 = arith.constant 0 : index
    %c0_39 = arith.constant 0 : index
    %61 = vector.load %arg6[%c0_38, %c0_39] : memref<128x128xbf16, #tpu.memory_space<vmem>>, vector<128x128xbf16>
    %62 = arith.truncf %60 : vector<16x128xf32> to vector<16x128xbf16>
    %cst_40 = arith.constant dense<0.000000e+00> : vector<16x128xf32>
    %63 = tpu.matmul %62, %61, %cst_40 {dimension_numbers = #tpu.dot_dimension_numbers<[1], [0], [0], [1], [0, 0, 1, 1], [], []>} : vector<16x128xbf16>, vector<128x128xbf16>, vector<16x128xf32> -> vector<16x128xf32>
    %c6 = arith.constant 6 : index
    %c0_41 = arith.constant 0 : index
    %64 = vector.load %arg7[%c6, %c0_41] : memref<7x256xf32, #tpu.memory_space<vmem>>, vector<1x128xf32>
    %65 = vector.broadcast %64 : vector<1x128xf32> to vector<16x128xf32>
    %66 = arith.addf %63, %65 : vector<16x128xf32>
    %c0_42 = arith.constant 0 : index
    %c0_43 = arith.constant 0 : index
    %67 = vector.load %arg8[%c0_42, %c0_43] : memref<16x384xf32, #tpu.memory_space<vmem>>, vector<16x128xf32>
    tpu.vector_store %arg8[%c0_42, %c0_43], %66 {strides = array<i32>} : memref<16x384xf32, #tpu.memory_space<vmem>>, vector<16x128xf32>,
    %c0_44 = arith.constant 0 : index
    %c128 = arith.constant 128 : index
    %68 = vector.load %arg8[%c0_44, %c128] : memref<16x384xf32, #tpu.memory_space<vmem>>, vector<16x128xf32>
    tpu.vector_store %arg8[%c0_44, %c128], %33 {strides = array<i32>} : memref<16x384xf32, #tpu.memory_space<vmem>>, vector<16x128xf32>,
    %c0_45 = arith.constant 0 : index
    %c256 = arith.constant 256 : index
    %69 = vector.load %arg8[%c0_45, %c256] : memref<16x384xf32, #tpu.memory_space<vmem>>, vector<16x128xf32>
    tpu.vector_store %arg8[%c0_45, %c256], %39 {strides = array<i32>} : memref<16x384xf32, #tpu.memory_space<vmem>>, vector<16x128xf32>,
    return
  }
  func.func @transform_0(%arg0: i32) -> (i32, i32) {
    %c0_i32 = arith.constant 0 : i32
    %c0_i32_0 = arith.constant 0 : i32
    return %arg0, %c0_i32 : i32, i32
  }
  func.func @transform_1(%arg0: i32) -> (i32, i32) {
    %c0_i32 = arith.constant 0 : i32
    %c0_i32_0 = arith.constant 0 : i32
    return %arg0, %c0_i32 : i32, i32
  }
  func.func @transform_2(%arg0: i32) -> (i32, i32) {
    %c0_i32 = arith.constant 0 : i32
    %c0_i32_0 = arith.constant 0 : i32
    %c0_i32_1 = arith.constant 0 : i32
    return %c0_i32, %c0_i32_0 : i32, i32
  }
  func.func @transform_3(%arg0: i32) -> (i32, i32, i32) {
    %c0_i32 = arith.constant 0 : i32
    %c0_i32_0 = arith.constant 0 : i32
    %c0_i32_1 = arith.constant 0 : i32
    %c0_i32_2 = arith.constant 0 : i32
    return %c0_i32, %c0_i32_0, %c0_i32_1 : i32, i32, i32
  }
  func.func @transform_4(%arg0: i32) -> (i32, i32) {
    %c0_i32 = arith.constant 0 : i32
    %c0_i32_0 = arith.constant 0 : i32
    %c0_i32_1 = arith.constant 0 : i32
    return %c0_i32, %c0_i32_0 : i32, i32
  }
  func.func @transform_5(%arg0: i32) -> (i32, i32) {
    %c0_i32 = arith.constant 0 : i32
    %c0_i32_0 = arith.constant 0 : i32
    %c0_i32_1 = arith.constant 0 : i32
    return %c0_i32, %c0_i32_0 : i32, i32
  }
  func.func @transform_6(%arg0: i32) -> (i32, i32) {
    %c0_i32 = arith.constant 0 : i32
    %c0_i32_0 = arith.constant 0 : i32
    %c0_i32_1 = arith.constant 0 : i32
    return %c0_i32, %c0_i32_0 : i32, i32
  }
  func.func @transform_7(%arg0: i32) -> (i32, i32) {
    %c0_i32 = arith.constant 0 : i32
    %c0_i32_0 = arith.constant 0 : i32
    return %arg0, %c0_i32 : i32, i32
  }
}

</mosaic_0001>

<llo_original>
// kernel: vae_forward.1
$region0: #{vae_forward.1}
  #allocation0 [shape = 'u32[]', space=smem, size = 0x4, offset = 0x4, fixed_abs, tag = 'smem constant byte address 0x4 - core index']
  #allocation1 [shape = 'u32[72,128]{1,0:T(1,128)}', space=vmem, size = 0x9000, scoped, tag = 'internal scratch']
  %s0 = inlined_call_operand.hbm [shape: f32[16,16], index: 0, kind: input, shape index: {}]
  %s1 = inlined_call_operand.hbm [shape: f32[16,128], index: 1, kind: input, shape index: {}]
  %s2 = inlined_call_operand.hbm [shape: bf16[16,128], index: 2, kind: input, shape index: {}]
  %s3 = inlined_call_operand.hbm [shape: bf16[4,128,128], index: 3, kind: input, shape index: {}]
  %s4 = inlined_call_operand.hbm [shape: bf16[128,256], index: 4, kind: input, shape index: {}]
  %s5 = inlined_call_operand.hbm [shape: bf16[128,128], index: 5, kind: input, shape index: {}]
  %s6 = inlined_call_operand.hbm [shape: f32[7,256], index: 6, kind: input, shape index: {}]
  %s7 = inlined_call_operand.vmem [shape: f32[16,384], index: 7, kind: output, shape index: {}]
  %s8 = sld [smem:[#allocation0]]
  $region66: #{vae_forward.1} parent=0
    _
  %s10 = ssub.s32 1, %s8
  %s11 = scalar_select 0, %s10, %s8
  $region1: #{vae_forward.1} parent=0
    #allocation2 [shape = 'u8[8192]{0}', space=vmem, size = 0x2000, scoped, tag = 'input window, operand 0, single buffered']
    #allocation3 [shape = 's32[1]{0}', space=sflag, size = 0x4, scoped, tag = 'scoped memory for vae_forward.1']
    #allocation4 [shape = 'u8[8192]{0}', space=vmem, size = 0x2000, scoped, tag = 'input window, operand 1, single buffered']
    #allocation5 [shape = 's32[1]{0}', space=sflag, size = 0x4, scoped, tag = 'scoped memory for vae_forward.1']
    #allocation6 [shape = 'u8[4096]{0}', space=vmem, size = 0x1000, scoped, tag = 'input window, operand 2, single buffered']
    #allocation7 [shape = 'u8[131072]{0}', space=vmem, size = 0x20000, scoped, tag = 'input window, operand 3, single buffered']
    #allocation8 [shape = 's32[1]{0}', space=sflag, size = 0x4, scoped, tag = 'scoped memory for vae_forward.1']
    #allocation9 [shape = 'u8[65536]{0}', space=vmem, size = 0x10000, scoped, tag = 'input window, operand 4, single buffered']
    #allocation10 [shape = 'u8[32768]{0}', space=vmem, size = 0x8000, scoped, tag = 'input window, operand 5, single buffered']
    #allocation11 [shape = 's32[1]{0}', space=sflag, size = 0x4, scoped, tag = 'scoped memory for vae_forward.1']
    #allocation12 [shape = 'u8[8192]{0}', space=vmem, size = 0x2000, scoped, tag = 'input window, operand 6, single buffered']
    %12 = vsyncpa [#allocation3], 0
    %13 = vsyncpa [#allocation5], 0
    %14 = vsyncpa [#allocation8], 0
    %15 = vsyncpa [#allocation11], 0
    // Predicated region
    $region2: #{vae_forward.1} parent=1 // pred_check
      _
    $region3: #{vae_forward.1} parent=1 // pred_check_branch
      %17 = sbr.rel (0) target = $region5
    $region4: #{vae_forward.1} parent=1 // pred_region
      %19 = vsyncadd [#allocation3], 0
      %s20 = sshll.u32 %s0, 4
      %s21 = int_to_ptr.hbm [resolvable:$true] %s20
      %s22 = sshll.u32 [#allocation2], 4
      %s23 = int_to_ptr.vmem [resolvable:$true] %s22
      %28 = dma.hbm_to_vmem [thread:$0]  %s21, 256, %s23, [#allocation3], 128, 128, 8
    $region5: #{vae_forward.1} parent=1 // pred_fallthru
      _
    // Predicated region
    $region6: #{vae_forward.1} parent=1 // pred_check
      _
    $region7: #{vae_forward.1} parent=1 // pred_check_branch
      %30 = sbr.rel (0) target = $region9
    $region8: #{vae_forward.1} parent=1 // pred_region
      %32 = vsyncadd [#allocation5], 0
      %s33 = sshll.u32 %s1, 4
      %s34 = int_to_ptr.hbm [resolvable:$true] %s33
      %s35 = sshll.u32 [#allocation4], 4
      %s36 = int_to_ptr.vmem [resolvable:$true] %s35
      %41 = dma.hbm_to_vmem [thread:$0]  %s34, 256, %s36, [#allocation5], 128, 128, 8
    $region9: #{vae_forward.1} parent=1 // pred_fallthru
      _
    // Predicated region
    $region10: #{vae_forward.1} parent=1 // pred_check
      _
    $region11: #{vae_forward.1} parent=1 // pred_check_branch
      %43 = sbr.rel (0) target = $region13
    $region12: #{vae_forward.1} parent=1 // pred_region
      %45 = vsyncadd [#allocation5], 0
      %s46 = sshll.u32 %s2, 4
      %s47 = int_to_ptr.hbm [resolvable:$true] %s46
      %s48 = sshll.u32 [#allocation6], 4
      %s49 = int_to_ptr.vmem [resolvable:$true] %s48
      %54 = dma.hbm_to_vmem [thread:$0]  %s47, 128, %s49, [#allocation5], 64, 64, 4
    $region13: #{vae_forward.1} parent=1 // pred_fallthru
      _
    // Predicated region
    $region14: #{vae_forward.1} parent=1 // pred_check
      _
    $region15: #{vae_forward.1} parent=1 // pred_check_branch
      %56 = sbr.rel (0) target = $region17
    $region16: #{vae_forward.1} parent=1 // pred_region
      %58 = vsyncadd [#allocation8], 0
      %s59 = sshll.u32 %s3, 4
      %s60 = int_to_ptr.hbm [resolvable:$true] %s59
      %s61 = sshll.u32 [#allocation7], 4
      %s62 = int_to_ptr.vmem [resolvable:$true] %s61
      %67 = dma.hbm_to_vmem [thread:$0]  %s60, 4096, %s62, [#allocation8], 64, 64, 4
    $region17: #{vae_forward.1} parent=1 // pred_fallthru
      _
    // Predicated region
    $region18: #{vae_forward.1} parent=1 // pred_check
      _
    $region19: #{vae_forward.1} parent=1 // pred_check_branch
      %69 = sbr.rel (0) target = $region21
    $region20: #{vae_forward.1} parent=1 // pred_region
      %71 = vsyncadd [#allocation8], 0
      %s72 = sshll.u32 %s4, 4
      %s73 = int_to_ptr.hbm [resolvable:$true] %s72
      %s74 = sshll.u32 [#allocation9], 4
      %s75 = int_to_ptr.vmem [resolvable:$true] %s74
      %80 = dma.hbm_to_vmem [thread:$0]  %s73, 2048, %s75, [#allocation8], 128, 128, 8
    $region21: #{vae_forward.1} parent=1 // pred_fallthru
      _
    // Predicated region
    $region22: #{vae_forward.1} parent=1 // pred_check
      _
    $region23: #{vae_forward.1} parent=1 // pred_check_branch
      %82 = sbr.rel (0) target = $region25
    $region24: #{vae_forward.1} parent=1 // pred_region
      %84 = vsyncadd [#allocation11], 0
      %s85 = sshll.u32 %s5, 4
      %s86 = int_to_ptr.hbm [resolvable:$true] %s85
      %s87 = sshll.u32 [#allocation10], 4
      %s88 = int_to_ptr.vmem [resolvable:$true] %s87
      %93 = dma.hbm_to_vmem [thread:$0]  %s86, 1024, %s88, [#allocation11], 64, 64, 4
    $region25: #{vae_forward.1} parent=1 // pred_fallthru
      _
    // Predicated region
    $region26: #{vae_forward.1} parent=1 // pred_check
      _
    $region27: #{vae_forward.1} parent=1 // pred_check_branch
      %95 = sbr.rel (0) target = $region29
    $region28: #{vae_forward.1} parent=1 // pred_region
      %97 = vsyncadd [#allocation11], 0
      %s99 = sshll.u32 %s6, 4
      %s100 = int_to_ptr.hbm [resolvable:$true] %s99
      %s101 = sshll.u32 [#allocation12], 4
      %s102 = int_to_ptr.vmem [resolvable:$true] %s101
      %104 = dma.hbm_to_vmem [thread:$0]  %s100, 256, %s102, [#allocation11]
    $region29: #{vae_forward.1} parent=1 // pred_fallthru
      _
    // Predicated region
    $region30: #{vae_forward.1} parent=1 // pred_check
      _
    $region31: #{vae_forward.1} parent=1 // pred_check_branch
      %106 = sbr.rel (0) target = $region33
    $region32: #{vae_forward.1} parent=1 // pred_region
      %108 = dma.done [#allocation3], 256
    $region33: #{vae_forward.1} parent=1 // pred_fallthru
      _
    // Predicated region
    $region34: #{vae_forward.1} parent=1 // pred_check
      _
    $region35: #{vae_forward.1} parent=1 // pred_check_branch
      %110 = sbr.rel (0) target = $region37
    $region36: #{vae_forward.1} parent=1 // pred_region
      %112 = dma.done [#allocation5], 256
    $region37: #{vae_forward.1} parent=1 // pred_fallthru
      _
    // Predicated region
    $region38: #{vae_forward.1} parent=1 // pred_check
      _
    $region39: #{vae_forward.1} parent=1 // pred_check_branch
      %114 = sbr.rel (0) target = $region41
    $region40: #{vae_forward.1} parent=1 // pred_region
      %116 = dma.done [#allocation5], 128
    $region41: #{vae_forward.1} parent=1 // pred_fallthru
      _
    // Predicated region
    $region42: #{vae_forward.1} parent=1 // pred_check
      _
    $region43: #{vae_forward.1} parent=1 // pred_check_branch
      %118 = sbr.rel (0) target = $region45
    $region44: #{vae_forward.1} parent=1 // pred_region
      %120 = dma.done [#allocation8], 4096
    $region45: #{vae_forward.1} parent=1 // pred_fallthru
      _
    // Predicated region
    $region46: #{vae_forward.1} parent=1 // pred_check
      _
    $region47: #{vae_forward.1} parent=1 // pred_check_branch
      %122 = sbr.rel (0) target = $region49
    $region48: #{vae_forward.1} parent=1 // pred_region
      %124 = dma.done [#allocation8], 2048
    $region49: #{vae_forward.1} parent=1 // pred_fallthru
      _
    // Predicated region
    $region50: #{vae_forward.1} parent=1 // pred_check
      _
    $region51: #{vae_forward.1} parent=1 // pred_check_branch
      %126 = sbr.rel (0) target = $region53
    $region52: #{vae_forward.1} parent=1 // pred_region
      %128 = dma.done [#allocation11], 1024
    $region53: #{vae_forward.1} parent=1 // pred_fallthru
      _
    // Predicated region
    $region54: #{vae_forward.1} parent=1 // pred_check
      _
    $region55: #{vae_forward.1} parent=1 // pred_check_branch
      %130 = sbr.rel (0) target = $region57
    $region56: #{vae_forward.1} parent=1 // pred_region
      %132 = dma.done [#allocation11], 256
    $region57: #{vae_forward.1} parent=1 // pred_fallthru
      _
    %v134 = vld [vmem:[#allocation2] sm:$0xff]
    %v135 = vld [vmem:[#allocation2 + $0x8] sm:$0xff]
    %v136 = vld [vmem:[#allocation6] sm:$0xf]
    %v137 = vld [vmem:[#allocation6 + $0x4] sm:$0xf]
    %v138 = vpack.c.bf16 %v135, %v134
    %v139 = vld [vmem:[#allocation12] ss:$0 sm:$0xff]
    %v142 = vunpack.c.l.b16 %v136
    %v143 = vunpack.c.l.b16 %v137
    %v144 = vpack.c.b16 %v143, %v142
    %vm146 = vcmask 130048
    %v148 = vsel %vm146, %v138, 0
    %150 = vmatpush.bf16.msra.mxu0 0
    %151 = vmatpush.bf16.msra.mxu0 0
    %152 = vmatpush.bf16.msra.mxu0 0
    %153 = vmatpush.bf16.msra.mxu0 0
    %154 = vmatpush.bf16.msra.mxu0 0
    %155 = vmatpush.bf16.msra.mxu0 0
    %156 = vmatpush.bf16.msra.mxu0 0
    %157 = vmatpush.bf16.msra.mxu0 %v144
    %158 = vmatmul.bf16.gmra.mxu0 %v148
    %v159 = vpop.f32.mrf.mxu0
    %v160 = vadd.f32 %v139, %v159
    %v161 = vpop.f32.mrf.mxu0
    %v162 = vadd.f32 %v139, %v161
    %163 = vdwg.mxu0
    %v164 = vmax.f32 %v160, 0.0
    %v165 = vmax.f32 %v162, 0.0
    %v166 = vld [vmem:[#allocation7] sm:$0xf]
    %v167 = vld [vmem:[#allocation7 + $0x4] sm:$0xf]
    %v168 = vld [vmem:[#allocation7 + $0x8] sm:$0xf]
    %v169 = vld [vmem:[#allocation7 + $0xc] sm:$0xf]
    %v170 = vld [vmem:[#allocation7 + $0x10] sm:$0xf]
    %v171 = vld [vmem:[#allocation7 + $0x14] sm:$0xf]
    %v172 = vld [vmem:[#allocation7 + $0x18] sm:$0xf]
    %v173 = vld [vmem:[#allocation7 + $0x1c] sm:$0xf]
    %v174 = vld [vmem:[#allocation7 + $0x20] sm:$0xf]
    %v175 = vld [vmem:[#allocation7 + $0x24] sm:$0xf]
    %v176 = vld [vmem:[#allocation7 + $0x28] sm:$0xf]
    %v177 = vld [vmem:[#allocation7 + $0x2c] sm:$0xf]
    %v178 = vld [vmem:[#allocation7 + $0x30] sm:$0xf]
    %v179 = vld [vmem:[#allocation7 + $0x34] sm:$0xf]
    %v180 = vld [vmem:[#allocation7 + $0x38] sm:$0xf]
    %v181 = vld [vmem:[#allocation7 + $0x3c] sm:$0xf]
    %v182 = vpack.c.bf16 %v165, %v164
    %v183 = vld [vmem:[#allocation12 + $0x1] ss:$0 sm:$0xff]
    %v200 = vunpack.c.l.b16 %v166
    %v201 = vunpack.c.l.b16 %v167
    %v202 = vunpack.c.l.b16 %v168
    %v203 = vunpack.c.l.b16 %v169
    %v204 = vunpack.c.l.b16 %v170
    %v205 = vunpack.c.l.b16 %v171
    %v206 = vunpack.c.l.b16 %v172
    %v207 = vunpack.c.l.b16 %v173
    %v208 = vunpack.c.l.b16 %v174
    %v209 = vunpack.c.l.b16 %v175
    %v210 = vunpack.c.l.b16 %v176
    %v211 = vunpack.c.l.b16 %v177
    %v212 = vunpack.c.l.b16 %v178
    %v213 = vunpack.c.l.b16 %v179
    %v214 = vunpack.c.l.b16 %v180
    %v215 = vunpack.c.l.b16 %v181
    %v216 = vpack.c.b16 %v201, %v200
    %v217 = vpack.c.b16 %v203, %v202
    %v218 = vpack.c.b16 %v205, %v204
    %v219 = vpack.c.b16 %v207, %v206
    %v220 = vpack.c.b16 %v209, %v208
    %v221 = vpack.c.b16 %v211, %v210
    %v222 = vpack.c.b16 %v213, %v212
    %v223 = vpack.c.b16 %v215, %v214
    %232 = vmatpush.bf16.msra.mxu0 %v223
    %233 = vmatpush.bf16.msra.mxu0 %v222
    %234 = vmatpush.bf16.msra.mxu0 %v221
    %235 = vmatpush.bf16.msra.mxu0 %v220
    %236 = vmatpush.bf16.msra.mxu0 %v219
    %237 = vmatpush.bf16.msra.mxu0 %v218
    %238 = vmatpush.bf16.msra.mxu0 %v217
    %239 = vmatpush.bf16.msra.mxu0 %v216
    %240 = vmatmul.bf16.gmra.mxu0 %v182
    %v241 = vpop.f32.mrf.mxu0
    %v242 = vadd.f32 %v183, %v241
    %v243 = vpop.f32.mrf.mxu0
    %v244 = vadd.f32 %v183, %v243
    %245 = vdwg.mxu0
    %v246 = vmax.f32 %v242, 0.0
    %v247 = vmax.f32 %v244, 0.0
    %s248 = scalar_lea.vmem [#allocation7], 64
    %v249 = vld [vmem:[%s248] sm:$0xf]
    %v250 = vld [vmem:[%s248 + $0x4] sm:$0xf]
    %v251 = vld [vmem:[%s248 + $0x8] sm:$0xf]
    %v252 = vld [vmem:[%s248 + $0xc] sm:$0xf]
    %v253 = vld [vmem:[%s248 + $0x10] sm:$0xf]
    %v254 = vld [vmem:[%s248 + $0x14] sm:$0xf]
    %v255 = vld [vmem:[%s248 + $0x18] sm:$0xf]
    %v256 = vld [vmem:[%s248 + $0x1c] sm:$0xf]
    %v257 = vld [vmem:[%s248 + $0x20] sm:$0xf]
    %v258 = vld [vmem:[%s248 + $0x24] sm:$0xf]
    %v259 = vld [vmem:[%s248 + $0x28] sm:$0xf]
    %v260 = vld [vmem:[%s248 + $0x2c] sm:$0xf]
    %v261 = vld [vmem:[%s248 + $0x30] sm:$0xf]
    %v262 = vld [vmem:[%s248 + $0x34] sm:$0xf]
    %v263 = vld [vmem:[%s248 + $0x38] sm:$0xf]
    %v264 = vld [vmem:[%s248 + $0x3c] sm:$0xf]
    %v265 = vpack.c.bf16 %v247, %v246
    %v266 = vld [vmem:[#allocation12 + $0x2] ss:$0 sm:$0xff]
    %v283 = vunpack.c.l.b16 %v249
    %v284 = vunpack.c.l.b16 %v250
    %v285 = vunpack.c.l.b16 %v251
    %v286 = vunpack.c.l.b16 %v252
    %v287 = vunpack.c.l.b16 %v253
    %v288 = vunpack.c.l.b16 %v254
    %v289 = vunpack.c.l.b16 %v255
    %v290 = vunpack.c.l.b16 %v256
    %v291 = vunpack.c.l.b16 %v257
    %v292 = vunpack.c.l.b16 %v258
    %v293 = vunpack.c.l.b16 %v259
    %v294 = vunpack.c.l.b16 %v260
    %v295 = vunpack.c.l.b16 %v261
    %v296 = vunpack.c.l.b16 %v262
    %v297 = vunpack.c.l.b16 %v263
    %v298 = vunpack.c.l.b16 %v264
    %v299 = vpack.c.b16 %v284, %v283
    %v300 = vpack.c.b16 %v286, %v285
    %v301 = vpack.c.b16 %v288, %v287
    %v302 = vpack.c.b16 %v290, %v289
    %v303 = vpack.c.b16 %v292, %v291
    %v304 = vpack.c.b16 %v294, %v293
    %v305 = vpack.c.b16 %v296, %v295
    %v306 = vpack.c.b16 %v298, %v297
    %315 = vmatpush.bf16.msra.mxu0 %v306
    %316 = vmatpush.bf16.msra.mxu0 %v305
    %317 = vmatpush.bf16.msra.mxu0 %v304
    %318 = vmatpush.bf16.msra.mxu0 %v303
    %319 = vmatpush.bf16.msra.mxu0 %v302
    %320 = vmatpush.bf16.msra.mxu0 %v301
    %321 = vmatpush.bf16.msra.mxu0 %v300
    %322 = vmatpush.bf16.msra.mxu0 %v299
    %323 = vmatmul.bf16.gmra.mxu0 %v265
    %v324 = vpop.f32.mrf.mxu0
    %v325 = vadd.f32 %v266, %v324
    %v326 = vpop.f32.mrf.mxu0
    %v327 = vadd.f32 %v266, %v326
    %328 = vdwg.mxu0
    %v329 = vmax.f32 %v325, 0.0
    %v330 = vmax.f32 %v327, 0.0
    %v331 = vld [vmem:[#allocation9] sm:$0xff]
    %v332 = vld [vmem:[#allocation9 + $0x8] sm:$0xff]
    %v333 = vld [vmem:[#allocation9 + $0x10] sm:$0xff]
    %v334 = vld [vmem:[#allocation9 + $0x18] sm:$0xff]
    %v335 = vld [vmem:[#allocation9 + $0x20] sm:$0xff]
    %v336 = vld [vmem:[#allocation9 + $0x28] sm:$0xff]
    %v337 = vld [vmem:[#allocation9 + $0x30] sm:$0xff]
    %v338 = vld [vmem:[#allocation9 + $0x38] sm:$0xff]
    %v339 = vld [vmem:[#allocation9 + $0x40] sm:$0xff]
    %v340 = vld [vmem:[#allocation9 + $0x48] sm:$0xff]
    %v341 = vld [vmem:[#allocation9 + $0x50] sm:$0xff]
    %v342 = vld [vmem:[#allocation9 + $0x58] sm:$0xff]
    %v343 = vld [vmem:[#allocation9 + $0x60] sm:$0xff]
    %v344 = vld [vmem:[#allocation9 + $0x68] sm:$0xff]
    %v345 = vld [vmem:[#allocation9 + $0x70] sm:$0xff]
    %v346 = vld [vmem:[#allocation9 + $0x78] sm:$0xff]
    %v347 = vpack.c.bf16 %v330, %v329
    %s348 = scalar_lea.vmem [#allocation12], 3
    %v349 = vld [vmem:[%s348] ss:$8 sm:$0x3]
    %v351 = vperm.slane %v349, 0
    %v352 = vperm.slane %v349, 1
    %v371 = vunpack.c.l.b16 %v331
    %v372 = vunpack.c.h.b16 %v331
    %v373 = vunpack.c.l.b16 %v332
    %v374 = vunpack.c.h.b16 %v332
    %v375 = vunpack.c.l.b16 %v333
    %v376 = vunpack.c.h.b16 %v333
    %v377 = vunpack.c.l.b16 %v334
    %v378 = vunpack.c.h.b16 %v334
    %v379 = vunpack.c.l.b16 %v335
    %v380 = vunpack.c.h.b16 %v335
    %v381 = vunpack.c.l.b16 %v336
    %v382 = vunpack.c.h.b16 %v336
    %v383 = vunpack.c.l.b16 %v337
    %v384 = vunpack.c.h.b16 %v337
    %v385 = vunpack.c.l.b16 %v338
    %v386 = vunpack.c.h.b16 %v338
    %v387 = vunpack.c.l.b16 %v339
    %v388 = vunpack.c.h.b16 %v339
    %v389 = vunpack.c.l.b16 %v340
    %v390 = vunpack.c.h.b16 %v340
    %v391 = vunpack.c.l.b16 %v341
    %v392 = vunpack.c.h.b16 %v341
    %v393 = vunpack.c.l.b16 %v342
    %v394 = vunpack.c.h.b16 %v342
    %v395 = vunpack.c.l.b16 %v343
    %v396 = vunpack.c.h.b16 %v343
    %v397 = vunpack.c.l.b16 %v344
    %v398 = vunpack.c.h.b16 %v344
    %v399 = vunpack.c.l.b16 %v345
    %v400 = vunpack.c.h.b16 %v345
    %v401 = vunpack.c.l.b16 %v346
    %v402 = vunpack.c.h.b16 %v346
    %v403 = vpack.c.b16 %v373, %v371
    %v404 = vpack.c.b16 %v374, %v372
    %v405 = vpack.c.b16 %v377, %v375
    %v406 = vpack.c.b16 %v378, %v376
    %v407 = vpack.c.b16 %v381, %v379
    %v408 = vpack.c.b16 %v382, %v380
    %v409 = vpack.c.b16 %v385, %v383
    %v410 = vpack.c.b16 %v386, %v384
    %v411 = vpack.c.b16 %v389, %v387
    %v412 = vpack.c.b16 %v390, %v388
    %v413 = vpack.c.b16 %v393, %v391
    %v414 = vpack.c.b16 %v394, %v392
    %v415 = vpack.c.b16 %v397, %v395
    %v416 = vpack.c.b16 %v398, %v396
    %v417 = vpack.c.b16 %v401, %v399
    %v418 = vpack.c.b16 %v402, %v400
    %435 = vmatpush.bf16.msra.mxu0 %v417
    %436 = vmatpush.bf16.msra.mxu0 %v415
    %437 = vmatpush.bf16.msra.mxu0 %v413
    %438 = vmatpush.bf16.msra.mxu0 %v411
    %439 = vmatpush.bf16.msra.mxu0 %v409
    %440 = vmatpush.bf16.msra.mxu0 %v407
    %441 = vmatpush.bf16.msra.mxu0 %v405
    %442 = vmatpush.bf16.msra.mxu0 %v403
    %443 = vmatmul.bf16.gmra.mxu0 %v347
    %v444 = vpop.f32.mrf.mxu0
    %v445 = vadd.f32 %v351, %v444
    %v446 = vpop.f32.mrf.mxu0
    %v447 = vadd.f32 %v351, %v446
    %448 = vdwg.mxu0
    %449 = vmatpush.bf16.msra.mxu0 %v418
    %450 = vmatpush.bf16.msra.mxu0 %v416
    %451 = vmatpush.bf16.msra.mxu0 %v414
    %452 = vmatpush.bf16.msra.mxu0 %v412
    %453 = vmatpush.bf16.msra.mxu0 %v410
    %454 = vmatpush.bf16.msra.mxu0 %v408
    %455 = vmatpush.bf16.msra.mxu0 %v406
    %456 = vmatpush.bf16.msra.mxu0 %v404
    %457 = vmatmul.bf16.gmra.mxu0 %v347
    %v458 = vpop.f32.mrf.mxu0
    %v459 = vadd.f32 %v352, %v458
    %v460 = vpop.f32.mrf.mxu0
    %v461 = vadd.f32 %v352, %v460
    %462 = vdwg.mxu0
    %v463 = vmax.f32 %v459, -20.0
    %v464 = vmax.f32 %v461, -20.0
    %v465 = vmin.f32 %v463, 0.5
    %v466 = vmin.f32 %v464, 0.5
    %v467 = vmul.f32 %v465, 1.442695
    %v468 = vpow.pop %v467
    %v469 = vmul.f32 %v466, 1.442695
    %v470 = vpow.pop %v469
    %v471 = vld [vmem:[#allocation4] sm:$0xff]
    %v472 = vld [vmem:[#allocation4 + $0x8] sm:$0xff]
    %v473 = vmul.f32 %v471, %v468
    %v474 = vmul.f32 %v472, %v470
    %v475 = vadd.f32 %v445, %v473
    %v476 = vadd.f32 %v447, %v474
    %s477 = scalar_lea.vmem [#allocation7], 128
    %v478 = vld [vmem:[%s477] sm:$0xf]
    %v479 = vld [vmem:[%s477 + $0x4] sm:$0xf]
    %v480 = vld [vmem:[%s477 + $0x8] sm:$0xf]
    %v481 = vld [vmem:[%s477 + $0xc] sm:$0xf]
    %v482 = vld [vmem:[%s477 + $0x10] sm:$0xf]
    %v483 = vld [vmem:[%s477 + $0x14] sm:$0xf]
    %v484 = vld [vmem:[%s477 + $0x18] sm:$0xf]
    %v485 = vld [vmem:[%s477 + $0x1c] sm:$0xf]
    %v486 = vld [vmem:[%s477 + $0x20] sm:$0xf]
    %v487 = vld [vmem:[%s477 + $0x24] sm:$0xf]
    %v488 = vld [vmem:[%s477 + $0x28] sm:$0xf]
    %v489 = vld [vmem:[%s477 + $0x2c] sm:$0xf]
    %v490 = vld [vmem:[%s477 + $0x30] sm:$0xf]
    %v491 = vld [vmem:[%s477 + $0x34] sm:$0xf]
    %v492 = vld [vmem:[%s477 + $0x38] sm:$0xf]
    %v493 = vld [vmem:[%s477 + $0x3c] sm:$0xf]
    %v494 = vpack.c.bf16 %v476, %v475
    %v495 = vld [vmem:[#allocation12 + $0x4] ss:$0 sm:$0xff]
    %v512 = vunpack.c.l.b16 %v478
    %v513 = vunpack.c.l.b16 %v479
    %v514 = vunpack.c.l.b16 %v480
    %v515 = vunpack.c.l.b16 %v481
    %v516 = vunpack.c.l.b16 %v482
    %v517 = vunpack.c.l.b16 %v483
    %v518 = vunpack.c.l.b16 %v484
    %v519 = vunpack.c.l.b16 %v485
    %v520 = vunpack.c.l.b16 %v486
    %v521 = vunpack.c.l.b16 %v487
    %v522 = vunpack.c.l.b16 %v488
    %v523 = vunpack.c.l.b16 %v489
    %v524 = vunpack.c.l.b16 %v490
    %v525 = vunpack.c.l.b16 %v491
    %v526 = vunpack.c.l.b16 %v492
    %v527 = vunpack.c.l.b16 %v493
    %v528 = vpack.c.b16 %v513, %v512
    %v529 = vpack.c.b16 %v515, %v514
    %v530 = vpack.c.b16 %v517, %v516
    %v531 = vpack.c.b16 %v519, %v518
    %v532 = vpack.c.b16 %v521, %v520
    %v533 = vpack.c.b16 %v523, %v522
    %v534 = vpack.c.b16 %v525, %v524
    %v535 = vpack.c.b16 %v527, %v526
    %544 = vmatpush.bf16.msra.mxu0 %v535
    %545 = vmatpush.bf16.msra.mxu0 %v534
    %546 = vmatpush.bf16.msra.mxu0 %v533
    %547 = vmatpush.bf16.msra.mxu0 %v532
    %548 = vmatpush.bf16.msra.mxu0 %v531
    %549 = vmatpush.bf16.msra.mxu0 %v530
    %550 = vmatpush.bf16.msra.mxu0 %v529
    %551 = vmatpush.bf16.msra.mxu0 %v528
    %552 = vmatmul.bf16.gmra.mxu0 %v494
    %v553 = vpop.f32.mrf.mxu0
    %v554 = vadd.f32 %v495, %v553
    %v555 = vpop.f32.mrf.mxu0
    %v556 = vadd.f32 %v495, %v555
    %557 = vdwg.mxu0
    %v558 = vmax.f32 %v554, 0.0
    %v559 = vmax.f32 %v556, 0.0
    %s560 = scalar_lea.vmem [#allocation7], 192
    %v561 = vld [vmem:[%s560] sm:$0xf]
    %v562 = vld [vmem:[%s560 + $0x4] sm:$0xf]
    %v563 = vld [vmem:[%s560 + $0x8] sm:$0xf]
    %v564 = vld [vmem:[%s560 + $0xc] sm:$0xf]
    %v565 = vld [vmem:[%s560 + $0x10] sm:$0xf]
    %v566 = vld [vmem:[%s560 + $0x14] sm:$0xf]
    %v567 = vld [vmem:[%s560 + $0x18] sm:$0xf]
    %v568 = vld [vmem:[%s560 + $0x1c] sm:$0xf]
    %v569 = vld [vmem:[%s560 + $0x20] sm:$0xf]
    %v570 = vld [vmem:[%s560 + $0x24] sm:$0xf]
    %v571 = vld [vmem:[%s560 + $0x28] sm:$0xf]
    %v572 = vld [vmem:[%s560 + $0x2c] sm:$0xf]
    %v573 = vld [vmem:[%s560 + $0x30] sm:$0xf]
    %v574 = vld [vmem:[%s560 + $0x34] sm:$0xf]
    %v575 = vld [vmem:[%s560 + $0x38] sm:$0xf]
    %v576 = vld [vmem:[%s560 + $0x3c] sm:$0xf]
    %v577 = vpack.c.bf16 %v559, %v558
    %v578 = vld [vmem:[#allocation12 + $0x5] ss:$0 sm:$0xff]
    %v595 = vunpack.c.l.b16 %v561
    %v596 = vunpack.c.l.b16 %v562
    %v597 = vunpack.c.l.b16 %v563
    %v598 = vunpack.c.l.b16 %v564
    %v599 = vunpack.c.l.b16 %v565
    %v600 = vunpack.c.l.b16 %v566
    %v601 = vunpack.c.l.b16 %v567
    %v602 = vunpack.c.l.b16 %v568
    %v603 = vunpack.c.l.b16 %v569
    %v604 = vunpack.c.l.b16 %v570
    %v605 = vunpack.c.l.b16 %v571
    %v606 = vunpack.c.l.b16 %v572
    %v607 = vunpack.c.l.b16 %v573
    %v608 = vunpack.c.l.b16 %v574
    %v609 = vunpack.c.l.b16 %v575
    %v610 = vunpack.c.l.b16 %v576
    %v611 = vpack.c.b16 %v596, %v595
    %v612 = vpack.c.b16 %v598, %v597
    %v613 = vpack.c.b16 %v600, %v599
    %v614 = vpack.c.b16 %v602, %v601
    %v615 = vpack.c.b16 %v604, %v603
    %v616 = vpack.c.b16 %v606, %v605
    %v617 = vpack.c.b16 %v608, %v607
    %v618 = vpack.c.b16 %v610, %v609
    %627 = vmatpush.bf16.msra.mxu0 %v618
    %628 = vmatpush.bf16.msra.mxu0 %v617
    %629 = vmatpush.bf16.msra.mxu0 %v616
    %630 = vmatpush.bf16.msra.mxu0 %v615
    %631 = vmatpush.bf16.msra.mxu0 %v614
    %632 = vmatpush.bf16.msra.mxu0 %v613
    %633 = vmatpush.bf16.msra.mxu0 %v612
    %634 = vmatpush.bf16.msra.mxu0 %v611
    %635 = vmatmul.bf16.gmra.mxu0 %v577
    %v636 = vpop.f32.mrf.mxu0
    %v637 = vadd.f32 %v578, %v636
    %v638 = vpop.f32.mrf.mxu0
    %v639 = vadd.f32 %v578, %v638
    %640 = vdwg.mxu0
    %v641 = vmax.f32 %v637, 0.0
    %v642 = vmax.f32 %v639, 0.0
    %v643 = vld [vmem:[#allocation10] sm:$0xf]
    %v644 = vld [vmem:[#allocation10 + $0x4] sm:$0xf]
    %v645 = vld [vmem:[#allocation10 + $0x8] sm:$0xf]
    %v646 = vld [vmem:[#allocation10 + $0xc] sm:$0xf]
    %v647 = vld [vmem:[#allocation10 + $0x10] sm:$0xf]
    %v648 = vld [vmem:[#allocation10 + $0x14] sm:$0xf]
    %v649 = vld [vmem:[#allocation10 + $0x18] sm:$0xf]
    %v650 = vld [vmem:[#allocation10 + $0x1c] sm:$0xf]
    %v651 = vld [vmem:[#allocation10 + $0x20] sm:$0xf]
    %v652 = vld [vmem:[#allocation10 + $0x24] sm:$0xf]
    %v653 = vld [vmem:[#allocation10 + $0x28] sm:$0xf]
    %v654 = vld [vmem:[#allocation10 + $0x2c] sm:$0xf]
    %v655 = vld [vmem:[#allocation10 + $0x30] sm:$0xf]
    %v656 = vld [vmem:[#allocation10 + $0x34] sm:$0xf]
    %v657 = vld [vmem:[#allocation10 + $0x38] sm:$0xf]
    %v658 = vld [vmem:[#allocation10 + $0x3c] sm:$0xf]
    %v659 = vpack.c.bf16 %v642, %v641
    %v660 = vld [vmem:[#allocation12 + $0x6] ss:$0 sm:$0xff]
    %v677 = vunpack.c.l.b16 %v643
    %v678 = vunpack.c.l.b16 %v644
    %v679 = vunpack.c.l.b16 %v645
    %v680 = vunpack.c.l.b16 %v646
    %v681 = vunpack.c.l.b16 %v647
    %v682 = vunpack.c.l.b16 %v648
    %v683 = vunpack.c.l.b16 %v649
    %v684 = vunpack.c.l.b16 %v650
    %v685 = vunpack.c.l.b16 %v651
    %v686 = vunpack.c.l.b16 %v652
    %v687 = vunpack.c.l.b16 %v653
    %v688 = vunpack.c.l.b16 %v654
    %v689 = vunpack.c.l.b16 %v655
    %v690 = vunpack.c.l.b16 %v656
    %v691 = vunpack.c.l.b16 %v657
    %v692 = vunpack.c.l.b16 %v658
    %v693 = vpack.c.b16 %v678, %v677
    %v694 = vpack.c.b16 %v680, %v679
    %v695 = vpack.c.b16 %v682, %v681
    %v696 = vpack.c.b16 %v684, %v683
    %v697 = vpack.c.b16 %v686, %v685
    %v698 = vpack.c.b16 %v688, %v687
    %v699 = vpack.c.b16 %v690, %v689
    %v700 = vpack.c.b16 %v692, %v691
    %709 = vmatpush.bf16.msra.mxu0 %v700
    %710 = vmatpush.bf16.msra.mxu0 %v699
    %711 = vmatpush.bf16.msra.mxu0 %v698
    %712 = vmatpush.bf16.msra.mxu0 %v697
    %713 = vmatpush.bf16.msra.mxu0 %v696
    %714 = vmatpush.bf16.msra.mxu0 %v695
    %715 = vmatpush.bf16.msra.mxu0 %v694
    %716 = vmatpush.bf16.msra.mxu0 %v693
    %717 = vmatmul.bf16.gmra.mxu0 %v659
    %v718 = vpop.f32.mrf.mxu0
    %v719 = vadd.f32 %v660, %v718
    %v720 = vpop.f32.mrf.mxu0
    %v721 = vadd.f32 %v660, %v720
    %722 = vdwg.mxu0
    %723 = vst [vmem:[%s7] sm:$0xff] %v719
    %724 = vst [vmem:[%s7 + $0x18] sm:$0xff] %v721
    %725 = vst [vmem:[%s7 + $0x8] sm:$0xff] %v445
    %726 = vst [vmem:[%s7 + $0x20] sm:$0xff] %v447
    %727 = vst [vmem:[%s7 + $0x10] sm:$0xff] %v468
    %728 = vst [vmem:[%s7 + $0x28] sm:$0xff] %v470
    // Predicated region
    $region58: #{vae_forward.1} parent=1 // pred_check
      _
    $region59: #{vae_forward.1} parent=1 // pred_check_branch
      %730 = sbr.rel (0) target = $region61
    $region60: #{vae_forward.1} parent=1 // pred_region
      _
    $region61: #{vae_forward.1} parent=1 // pred_fallthru
      _
    // Predicated region
    $region62: #{vae_forward.1} parent=1 // pred_check
      _
    $region63: #{vae_forward.1} parent=1 // pred_check_branch
      %732 = sbr.rel (0) target = $region65
    $region64: #{vae_forward.1} parent=1 // pred_region
      _
    $region65: #{vae_forward.1} parent=1 // pred_fallthru
      _
    %733 = vsyncpa [#allocation3], 1
    %734 = vsyncpa [#allocation5], 1
    %735 = vsyncpa [#allocation8], 1
    %736 = vsyncpa [#allocation11], 1

</llo_original>
